<compile_context>
chip_gen: v7x
topology: tpu7x:2x2x1
jax: 0.10.0
libtpu: 0.0.40
codegen_flags: <defaults>
</compile_context>

<pallas_src>
import functools

import jax
import jax.numpy as jnp
from jax.experimental import pallas as pl
from jax.experimental.pallas import tpu as pltpu


# --------------------------------------------------------------------------
# Single-pass kernel: one (TB, C, HW) slab per grid step.
# --------------------------------------------------------------------------
def _csse_kernel(x_ref, w1t_ref, b1_ref, w2t_ref, b2_ref, wc_ref, bc_ref, o_ref,
                 *, inv_hw, use_dot):
    # x_ref  : (TB, C, HW) activation tile (native dtype)
    # w1t_ref: (C, Cr)  b1_ref: (1, Cr)   -- fc1, pre-transposed  (f32)
    # w2t_ref: (Cr, C)  b2_ref: (1, C)    -- fc2, pre-transposed  (f32)
    # wc_ref : (C, 1)   bc_ref: (1, 1)    -- 1x1 conv (wc pre-cast to x dtype)
    x = x_ref[...]                                                  # (TB, C, HW)

    # --- cSE squeeze: global average pool over the spatial (lane) axis.
    sq = jnp.sum(x, axis=-1, dtype=jnp.float32) * inv_hw            # (TB, C)

    # --- tiny excitation MLP (negligible next to the memory traffic).
    h = jnp.dot(sq, w1t_ref[...], preferred_element_type=jnp.float32) + b1_ref[...]
    h = jnp.maximum(h, 0.0)                                         # (TB, Cr)
    s_c = jax.nn.sigmoid(
        jnp.dot(h, w2t_ref[...], preferred_element_type=jnp.float32)
        + b2_ref[...])                                              # (TB, C)

    # --- sSE logits: channel contraction per pixel.
    if use_dot:
        # MXU path for large C.
        logits = jnp.einsum("bch,cd->bhd", x, wc_ref[...],
                            preferred_element_type=jnp.float32)[:, :, 0]   # (TB, HW)
    else:
        # VPU multiply + XLU sublane reduce for small C (MXU would waste rows).
        logits = jnp.sum(x * wc_ref[...][None, :, :], axis=1,
                         dtype=jnp.float32)                         # (TB, HW)
    s_s = jax.nn.sigmoid(logits + bc_ref[...])                      # (TB, HW)

    # --- combine in the native dtype: max(channel-gated, spatial-gated).
    s_c = s_c.astype(x.dtype)[:, :, None]                           # (TB, C, 1)
    s_s = s_s.astype(x.dtype)[:, None, :]                           # (TB, 1, HW)
    o_ref[...] = jnp.maximum(x * s_c, x * s_s)


# --------------------------------------------------------------------------
# Two-pass fallback (per-row slab larger than the VMEM budget).
# Pass 1: per-channel spatial sums (accumulated over HW tiles) + sSE logits.
# --------------------------------------------------------------------------
def _gates_kernel(x_ref, wc_ref, bc_ref, sum_ref, logit_ref, *, hw, use_dot):
    # x_ref   : (1, C, THW)    wc_ref: (C, 1)   bc_ref: (1, 1)
    # sum_ref : (1, C, 1) f32  (accumulator, resident across the HW axis)
    # logit_ref: (1, 1, THW) f32
    h = pl.program_id(1)
    x = x_ref[0]                                                    # (C, THW)
    thw = x.shape[-1]

    # Mask padded lanes of the final partial tile so they don't perturb the sum.
    lane = jax.lax.broadcasted_iota(jnp.int32, (1, thw), 1)
    valid = (h * thw + lane) < hw                                   # (1, THW)
    xm = jnp.where(valid, x, jnp.zeros((), x.dtype))
    contrib = jnp.sum(xm, axis=-1, dtype=jnp.float32, keepdims=True)  # (C, 1)

    @pl.when(h == 0)
    def _():
        sum_ref[0] = contrib

    @pl.when(h != 0)
    def _():
        sum_ref[0] = sum_ref[0] + contrib

    if use_dot:
        logits = jnp.einsum("cd,ch->dh", wc_ref[...], x,
                            preferred_element_type=jnp.float32)     # (1, THW)
    else:
        logits = jnp.sum(x * wc_ref[...], axis=0, dtype=jnp.float32,
                         keepdims=True)                             # (1, THW)
    logit_ref[0] = logits + bc_ref[...]


# Pass 2: apply the channel and spatial gates (recomputes the tiny MLP per tile).
def _apply_kernel(x_ref, sum_ref, logit_ref, w1_ref, b1_ref, w2_ref, b2_ref,
                  o_ref, *, inv_hw):
    # x_ref: (1, C, THW)   sum_ref: (1, C, 1) f32   logit_ref: (1, 1, THW) f32
    # w1_ref: (Cr, C)  b1_ref: (Cr, 1)  w2_ref: (C, Cr)  b2_ref: (C, 1)  (f32)
    x = x_ref[0]                                                    # (C, THW)
    sq = sum_ref[0] * inv_hw                                        # (C, 1)
    h1 = jnp.maximum(
        jnp.dot(w1_ref[...], sq, preferred_element_type=jnp.float32)
        + b1_ref[...], 0.0)                                         # (Cr, 1)
    s_c = jax.nn.sigmoid(
        jnp.dot(w2_ref[...], h1, preferred_element_type=jnp.float32)
        + b2_ref[...])                                              # (C, 1)
    s_s = jax.nn.sigmoid(logit_ref[0])                              # (1, THW)
    s_c = s_c.astype(x.dtype)
    s_s = s_s.astype(x.dtype)
    o_ref[0] = jnp.maximum(x * s_c, x * s_s)


# --------------------------------------------------------------------------
# Wrapper
# --------------------------------------------------------------------------
def channel_spatial_se_pallas(x, w1, b1, w2, b2, wc, bc, *,
                              force_two_pass=False, force_dot=False,
                              _force_thw=None):
    """x: (B, C, H, W) NCHW.
    w1: (Cr, C), b1: (Cr,)      -- fc1 (PyTorch nn.Linear (out, in) convention)
    w2: (C, Cr), b2: (C,)       -- fc2
    wc: (1, C, 1, 1), bc: (1,)  -- 1x1 Conv2d weight/bias (spatial SE)
    """
    B, C, H, W = x.shape
    Cr = w1.shape[0]
    HW = H * W
    itemsize = x.dtype.itemsize

    x3 = x.reshape(B, C, HW)            # metadata-only reshape, no HBM pass

    f32 = jnp.float32
    w1f = jnp.asarray(w1, f32).reshape(Cr, C)
    b1f = jnp.asarray(b1, f32).reshape(Cr)
    w2f = jnp.asarray(w2, f32).reshape(C, Cr)
    b2f = jnp.asarray(b2, f32).reshape(C)
    wc_col = jnp.asarray(wc, x.dtype).reshape(C, 1)   # hoisted cast (no per-step cast)
    bc_sc = jnp.asarray(bc, f32).reshape(1, 1)

    # Generation-aware VMEM budget: ~40 MiB on 64 MiB parts (v7x),
    # ~100 MiB on 128 MiB parts (v5e/v6e).
    try:
        vmem_cap = int(getattr(pltpu.get_tpu_info(), "vmem_capacity_bytes",
                               64 << 20))
    except Exception:
        vmem_cap = 64 << 20
    budget = max(min(vmem_cap - (24 << 20), 100 << 20), 16 << 20)

    use_dot = bool(force_dot) or C >= 128
    params_bytes = 4 * (2 * C * Cr + 3 * C + 2 * Cr + 8)
    slack = 4 << 20

    # Per-batch-row footprint: double-buffered in + double-buffered out +
    # ~2 f32-sized in-kernel temporaries.
    per_row_cost = 4 * C * HW * itemsize + 2 * C * HW * 4
    tb_max = (budget - params_bytes - slack) // per_row_cost
    if force_two_pass:
        tb_max = 0

    inv_hw = 1.0 / float(HW)

    if tb_max >= 1:
        # ------------------------- single-pass path -------------------------
        # Largest divisor of B that fits the VMEM budget; keep grid length >= 2
        # when B >= 2 so both v7x TensorCores get work.
        limit = int(tb_max) if B < 2 else min(int(tb_max), B // 2)
        limit = max(limit, 1)
        tb = 1
        for d in range(1, B + 1):
            if B % d == 0 and d <= limit:
                tb = d
        grid_b = B // tb

        cost = pl.CostEstimate(
            flops=int(6 * B * C * HW),
            transcendentals=int(B * (C + HW)),
            bytes_accessed=int(2 * B * C * HW * itemsize))

        out3 = pl.pallas_call(
            functools.partial(_csse_kernel, inv_hw=inv_hw, use_dot=use_dot),
            out_shape=jax.ShapeDtypeStruct((B, C, HW), x.dtype),
            grid=(grid_b,),
            in_specs=[
                pl.BlockSpec((tb, C, HW), lambda b: (b, 0, 0)),   # x, TB rows
                pl.BlockSpec((C, Cr), lambda b: (0, 0)),          # fc1.weight^T
                pl.BlockSpec((1, Cr), lambda b: (0, 0)),          # fc1.bias
                pl.BlockSpec((Cr, C), lambda b: (0, 0)),          # fc2.weight^T
                pl.BlockSpec((1, C), lambda b: (0, 0)),           # fc2.bias
                pl.BlockSpec((C, 1), lambda b: (0, 0)),           # conv weight
                pl.BlockSpec((1, 1), lambda b: (0, 0)),           # conv bias
            ],
            out_specs=pl.BlockSpec((tb, C, HW), lambda b: (b, 0, 0)),
            compiler_params=pltpu.CompilerParams(
                dimension_semantics=("parallel",),
                vmem_limit_bytes=int(budget)),
            cost_estimate=cost,
        )(x3, w1f.T, b1f.reshape(1, Cr), w2f.T, b2f.reshape(1, C),
          wc_col, bc_sc)
        return out3.reshape(B, C, H, W)

    # --------------------------- two-pass path ------------------------------
    # Per-row slab exceeds the VMEM budget: tile the spatial axis instead of
    # silently clamping the VMEM limit.
    per_lane_cost = C * (4 * itemsize + 8) + 16
    thw = (budget - params_bytes - slack) // per_lane_cost
    thw = max(128, (thw // 128) * 128)
    thw = min(thw, ((HW + 127) // 128) * 128)
    if _force_thw is not None:
        thw = max(128, (int(_force_thw) // 128) * 128)
    n_hw = (HW + thw - 1) // thw

    # Pass 1: per-channel sums (accumulated across HW tiles) + sSE logits.
    sums, logits = pl.pallas_call(
        functools.partial(_gates_kernel, hw=HW, use_dot=use_dot),
        out_shape=(jax.ShapeDtypeStruct((B, C, 1), jnp.float32),
                   jax.ShapeDtypeStruct((B, 1, HW), jnp.float32)),
        grid=(B, n_hw),
        in_specs=[
            pl.BlockSpec((1, C, thw), lambda b, h: (b, 0, h)),
            pl.BlockSpec((C, 1), lambda b, h: (0, 0)),
            pl.BlockSpec((1, 1), lambda b, h: (0, 0)),
        ],
        out_specs=(
            pl.BlockSpec((1, C, 1), lambda b, h: (b, 0, 0)),
            pl.BlockSpec((1, 1, thw), lambda b, h: (b, 0, h)),
        ),
        compiler_params=pltpu.CompilerParams(
            dimension_semantics=("parallel", "arbitrary"),
            vmem_limit_bytes=int(budget)),
        cost_estimate=pl.CostEstimate(
            flops=int(3 * B * C * HW), transcendentals=0,
            bytes_accessed=int(B * C * HW * itemsize)),
    )(x3, wc_col, bc_sc)

    # Pass 2: apply the channel + spatial gates.
    out3 = pl.pallas_call(
        functools.partial(_apply_kernel, inv_hw=inv_hw),
        out_shape=jax.ShapeDtypeStruct((B, C, HW), x.dtype),
        grid=(B, n_hw),
        in_specs=[
            pl.BlockSpec((1, C, thw), lambda b, h: (b, 0, h)),
            pl.BlockSpec((1, C, 1), lambda b, h: (b, 0, 0)),
            pl.BlockSpec((1, 1, thw), lambda b, h: (b, 0, h)),
            pl.BlockSpec((Cr, C), lambda b, h: (0, 0)),
            pl.BlockSpec((Cr, 1), lambda b, h: (0, 0)),
            pl.BlockSpec((C, Cr), lambda b, h: (0, 0)),
            pl.BlockSpec((C, 1), lambda b, h: (0, 0)),
        ],
        out_specs=pl.BlockSpec((1, C, thw), lambda b, h: (b, 0, h)),
        compiler_params=pltpu.CompilerParams(
            dimension_semantics=("parallel", "parallel"),
            vmem_limit_bytes=int(budget)),
        cost_estimate=pl.CostEstimate(
            flops=int(5 * B * C * HW), transcendentals=int(B * (C + HW)),
            bytes_accessed=int(2 * B * C * HW * itemsize)),
    )(x3, sums, logits, w1f, b1f.reshape(Cr, 1), w2f, b2f.reshape(C, 1))
    return out3.reshape(B, C, H, W)


# --------------------------------------------------------------------------
# Pure-JAX reference mirroring the PyTorch ChannelSpatialSELayer forward.
# --------------------------------------------------------------------------
def channel_spatial_se_ref(x, w1, b1, w2, b2, wc, bc):
    B, C, H, W = x.shape
    sq = x.reshape(B, C, -1).mean(axis=2)
    h = jax.nn.relu(sq @ w1.T + b1)
    s_c = jax.nn.sigmoid(h @ w2.T + b2)
    cse = x * s_c.reshape(B, C, 1, 1)
    logits = jnp.einsum("bchw,c->bhw", x, wc.reshape(C)) + bc.reshape(())
    sse = x * jax.nn.sigmoid(logits)[:, None, :, :]
    return jnp.maximum(cse, sse)


def _init_params(key, C, Cr, dtype=jnp.float32):
    # PyTorch default init bounds: uniform(-1/sqrt(fan_in), 1/sqrt(fan_in)).
    k1, k2, k3, k4, k5, k6 = jax.random.split(key, 6)
    bnd1 = 1.0 / jnp.sqrt(jnp.float32(C))
    bnd2 = 1.0 / jnp.sqrt(jnp.float32(Cr))
    w1 = jax.random.uniform(k1, (Cr, C), dtype, -bnd1, bnd1)       # fc1.weight
    b1 = jax.random.uniform(k2, (Cr,), dtype, -bnd1, bnd1)         # fc1.bias
    w2 = jax.random.uniform(k3, (C, Cr), dtype, -bnd2, bnd2)       # fc2.weight
    b2 = jax.random.uniform(k4, (C,), dtype, -bnd2, bnd2)          # fc2.bias
    wc = jax.random.uniform(k5, (1, C, 1, 1), dtype, -bnd1, bnd1)  # conv.weight
    bc = jax.random.uniform(k6, (1,), dtype, -bnd1, bnd1)          # conv.bias
    return w1, b1, w2, b2, wc, bc


if __name__ == "__main__":
    key = jax.random.PRNGKey(0)
    kx, kp, kx2, kp2 = jax.random.split(key, 4)

    # Primary case: batch=2, channels=4, 16x16 spatial.
    B, C, H, W = 2, 4, 16, 16
    x = jax.random.normal(kx, (B, C, H, W), dtype=jnp.float32)
    params = _init_params(kp, C, C // 2)

    out = jax.block_until_ready(channel_spatial_se_pallas(x, *params))
    ref = channel_spatial_se_ref(x, *params)
    assert out.shape == x.shape and out.dtype == x.dtype
    assert jnp.allclose(out, ref, atol=1e-5, rtol=1e-5), "mismatch (primary)"

    # Secondary checks (still tiny): non-128-multiple spatial size (7x7), the
    # MXU-dot sSE path, and the two-pass fallback (partial-tile lane masking).
    B2, C2, H2, W2 = 2, 8, 7, 7
    x2 = jax.random.normal(kx2, (B2, C2, H2, W2), dtype=jnp.float32)
    params2 = _init_params(kp2, C2, C2 // 2)
    ref2 = channel_spatial_se_ref(x2, *params2)
    for kwargs in (dict(),                      # single-pass, VPU sSE, HW=49
                   dict(force_dot=True),        # single-pass, MXU sSE
                   dict(force_two_pass=True)):  # two-pass, partial-tile mask
        o2 = jax.block_until_ready(
            channel_spatial_se_pallas(x2, *params2, **kwargs))
        assert jnp.allclose(o2, ref2, atol=1e-5, rtol=1e-5), f"mismatch {kwargs}"

    # Two-pass with multiple HW tiles (cross-tile squeeze accumulation).
    o1 = jax.block_until_ready(
        channel_spatial_se_pallas(x, *params, force_two_pass=True,
                                  _force_thw=128))
    assert jnp.allclose(o1, ref, atol=1e-5, rtol=1e-5), "mismatch (two-pass tiled)"

    print("KERNEL_OK")
</pallas_src>

<mosaic_0001>
module attributes {stable_mosaic.version = 11 : i64} {
  func.func @_csse_kernel(%arg0: i32, %arg1: memref<1x4x256xf32, #tpu.memory_space<vmem>>, %arg2: memref<4x2xf32, #tpu.memory_space<vmem>>, %arg3: memref<1x2xf32, #tpu.memory_space<vmem>>, %arg4: memref<2x4xf32, #tpu.memory_space<vmem>>, %arg5: memref<1x4xf32, #tpu.memory_space<vmem>>, %arg6: memref<4x1xf32, #tpu.memory_space<vmem>>, %arg7: memref<1x1xf32, #tpu.memory_space<vmem>>, %arg8: memref<1x4x256xf32, #tpu.memory_space<vmem>>) attributes {dimension_semantics = [#tpu.dimension_semantics<parallel>], iteration_bounds = array<i64: 2>, scalar_prefetch = 0 : i64, scratch_operands = 0 : i64, tpu.core_type = #tpu.core_type<tc>, window_params = [{transform_indices = @transform_0, window_bounds = array<i64: 1, 4, 256>}, {pipeline_mode = #tpu.pipeline_mode<synchronous>, transform_indices = @transform_1, window_bounds = array<i64: 4, 2>}, {pipeline_mode = #tpu.pipeline_mode<synchronous>, transform_indices = @transform_2, window_bounds = array<i64: 1, 2>}, {pipeline_mode = #tpu.pipeline_mode<synchronous>, transform_indices = @transform_3, window_bounds = array<i64: 2, 4>}, {pipeline_mode = #tpu.pipeline_mode<synchronous>, transform_indices = @transform_4, window_bounds = array<i64: 1, 4>}, {pipeline_mode = #tpu.pipeline_mode<synchronous>, transform_indices = @transform_5, window_bounds = array<i64: 4, 1>}, {pipeline_mode = #tpu.pipeline_mode<synchronous>, transform_indices = @transform_6, window_bounds = array<i64: 1, 1>}, {transform_indices = @transform_7, window_bounds = array<i64: 1, 4, 256>}]} {
    %c0 = arith.constant 0 : index
    %c0_0 = arith.constant 0 : index
    %c0_1 = arith.constant 0 : index
    %0 = vector.load %arg1[%c0, %c0_0, %c0_1] : memref<1x4x256xf32, #tpu.memory_space<vmem>>, vector<1x4x256xf32>
    %cst = arith.constant dense<0.000000e+00> : vector<1x4xf32>
    %1 = vector.multi_reduction <add>, %0, %cst [2] : vector<1x4x256xf32> to vector<1x4xf32>
    %cst_2 = arith.constant 3.906250e-03 : f32
    %2 = vector.broadcast %cst_2 : f32 to vector<1x4xf32>
    %3 = arith.mulf %1, %2 : vector<1x4xf32>
    %c0_3 = arith.constant 0 : index
    %c0_4 = arith.constant 0 : index
    %4 = vector.load %arg2[%c0_3, %c0_4] : memref<4x2xf32, #tpu.memory_space<vmem>>, vector<4x2xf32>
    %cst_5 = arith.constant dense<0.000000e+00> : vector<1x2xf32>
    %5 = tpu.matmul %3, %4, %cst_5 {dimension_numbers = #tpu.dot_dimension_numbers<[1], [0], [0], [1], [0, 0, 1, 1], [], []>} : vector<1x4xf32>, vector<4x2xf32>, vector<1x2xf32> -> vector<1x2xf32>
    %c0_6 = arith.constant 0 : index
    %c0_7 = arith.constant 0 : index
    %6 = vector.load %arg3[%c0_6, %c0_7] : memref<1x2xf32, #tpu.memory_space<vmem>>, vector<1x2xf32>
    %7 = arith.addf %5, %6 : vector<1x2xf32>
    %cst_8 = arith.constant 0.000000e+00 : f32
    %8 = vector.broadcast %cst_8 : f32 to vector<1x2xf32>
    %9 = arith.maximumf %7, %8 : vector<1x2xf32>
    %c0_9 = arith.constant 0 : index
    %c0_10 = arith.constant 0 : index
    %10 = vector.load %arg4[%c0_9, %c0_10] : memref<2x4xf32, #tpu.memory_space<vmem>>, vector<2x4xf32>
    %cst_11 = arith.constant dense<0.000000e+00> : vector<1x4xf32>
    %11 = tpu.matmul %9, %10, %cst_11 {dimension_numbers = #tpu.dot_dimension_numbers<[1], [0], [0], [1], [0, 0, 1, 1], [], []>} : vector<1x2xf32>, vector<2x4xf32>, vector<1x4xf32> -> vector<1x4xf32>
    %c0_12 = arith.constant 0 : index
    %c0_13 = arith.constant 0 : index
    %12 = vector.load %arg5[%c0_12, %c0_13] : memref<1x4xf32, #tpu.memory_space<vmem>>, vector<1x4xf32>
    %13 = arith.addf %11, %12 : vector<1x4xf32>
    %14 = arith.negf %13 : vector<1x4xf32>
    %15 = math.exp %14 : vector<1x4xf32>
    %cst_14 = arith.constant 1.000000e+00 : f32
    %16 = vector.broadcast %cst_14 : f32 to vector<1x4xf32>
    %17 = arith.addf %16, %15 : vector<1x4xf32>
    %18 = arith.divf %16, %17 : vector<1x4xf32>
    %c0_15 = arith.constant 0 : index
    %c0_16 = arith.constant 0 : index
    %19 = vector.load %arg6[%c0_15, %c0_16] : memref<4x1xf32, #tpu.memory_space<vmem>>, vector<4x1xf32>
    %20 = vector.shape_cast %19 : vector<4x1xf32> to vector<1x4x1xf32>
    %21 = vector.broadcast %20 : vector<1x4x1xf32> to vector<1x4x256xf32>
    %22 = arith.mulf %0, %21 : vector<1x4x256xf32>
    %cst_17 = arith.constant dense<0.000000e+00> : vector<1x256xf32>
    %23 = vector.multi_reduction <add>, %22, %cst_17 [1] : vector<1x4x256xf32> to vector<1x256xf32>
    %c0_18 = arith.constant 0 : index
    %c0_19 = arith.constant 0 : index
    %24 = vector.load %arg7[%c0_18, %c0_19] : memref<1x1xf32, #tpu.memory_space<vmem>>, vector<1x1xf32>
    %25 = vector.broadcast %24 : vector<1x1xf32> to vector<1x256xf32>
    %26 = arith.addf %23, %25 : vector<1x256xf32>
    %27 = arith.negf %26 : vector<1x256xf32>
    %28 = math.exp %27 : vector<1x256xf32>
    %cst_20 = arith.constant 1.000000e+00 : f32
    %29 = vector.broadcast %cst_20 : f32 to vector<1x256xf32>
    %30 = arith.addf %29, %28 : vector<1x256xf32>
    %31 = arith.divf %29, %30 : vector<1x256xf32>
    %32 = vector.shape_cast %18 : vector<1x4xf32> to vector<1x4x1xf32>
    %33 = vector.shape_cast %31 : vector<1x256xf32> to vector<1x1x256xf32>
    %34 = vector.broadcast %32 : vector<1x4x1xf32> to vector<1x4x256xf32>
    %35 = arith.mulf %0, %34 : vector<1x4x256xf32>
    %36 = vector.broadcast %33 : vector<1x1x256xf32> to vector<1x4x256xf32>
    %37 = arith.mulf %0, %36 : vector<1x4x256xf32>
    %38 = arith.maximumf %35, %37 : vector<1x4x256xf32>
    %c0_21 = arith.constant 0 : index
    %c0_22 = arith.constant 0 : index
    %c0_23 = arith.constant 0 : index
    %39 = vector.load %arg8[%c0_21, %c0_22, %c0_23] : memref<1x4x256xf32, #tpu.memory_space<vmem>>, vector<1x4x256xf32>
    tpu.vector_store %arg8[%c0_21, %c0_22, %c0_23], %38 {strides = array<i32>} : memref<1x4x256xf32, #tpu.memory_space<vmem>>, vector<1x4x256xf32>,
    return
  }
  func.func @transform_0(%arg0: i32) -> (i32, i32, i32) {
    %c0_i32 = arith.constant 0 : i32
    %c0_i32_0 = arith.constant 0 : i32
    %c0_i32_1 = arith.constant 0 : i32
    return %arg0, %c0_i32, %c0_i32_0 : i32, i32, i32
  }
  func.func @transform_1(%arg0: i32) -> (i32, i32) {
    %c0_i32 = arith.constant 0 : i32
    %c0_i32_0 = arith.constant 0 : i32
    %c0_i32_1 = arith.constant 0 : i32
    return %c0_i32, %c0_i32_0 : i32, i32
  }
  func.func @transform_2(%arg0: i32) -> (i32, i32) {
    %c0_i32 = arith.constant 0 : i32
    %c0_i32_0 = arith.constant 0 : i32
    %c0_i32_1 = arith.constant 0 : i32
    return %c0_i32, %c0_i32_0 : i32, i32
  }
  func.func @transform_3(%arg0: i32) -> (i32, i32) {
    %c0_i32 = arith.constant 0 : i32
    %c0_i32_0 = arith.constant 0 : i32
    %c0_i32_1 = arith.constant 0 : i32
    return %c0_i32, %c0_i32_0 : i32, i32
  }
  func.func @transform_4(%arg0: i32) -> (i32, i32) {
    %c0_i32 = arith.constant 0 : i32
    %c0_i32_0 = arith.constant 0 : i32
    %c0_i32_1 = arith.constant 0 : i32
    return %c0_i32, %c0_i32_0 : i32, i32
  }
  func.func @transform_5(%arg0: i32) -> (i32, i32) {
    %c0_i32 = arith.constant 0 : i32
    %c0_i32_0 = arith.constant 0 : i32
    %c0_i32_1 = arith.constant 0 : i32
    return %c0_i32, %c0_i32_0 : i32, i32
  }
  func.func @transform_6(%arg0: i32) -> (i32, i32) {
    %c0_i32 = arith.constant 0 : i32
    %c0_i32_0 = arith.constant 0 : i32
    %c0_i32_1 = arith.constant 0 : i32
    return %c0_i32, %c0_i32_0 : i32, i32
  }
  func.func @transform_7(%arg0: i32) -> (i32, i32, i32) {
    %c0_i32 = arith.constant 0 : i32
    %c0_i32_0 = arith.constant 0 : i32
    %c0_i32_1 = arith.constant 0 : i32
    return %arg0, %c0_i32, %c0_i32_0 : i32, i32, i32
  }
}

</mosaic_0001>

<llo_original>
// kernel: tpu_custom_call.1
$region0: #{tpu_custom_call.1}
  #allocation0 [shape = 'u32[]', space=smem, size = 0x4, offset = 0x4, fixed_abs, tag = 'smem constant byte address 0x4 - core index']
  #allocation1 [shape = 'u32[144,128]{1,0:T(1,128)}', space=vmem, size = 0x12000, scoped, tag = 'internal scratch']
  #allocation2 [shape = 'f32[1,1]{1,0:T(1,128)S(1)}', space=vmem, size = 0x200, scoped, tag = 'scoped memory for tpu_custom_call.1']
  %s0 = inlined_call_operand.hbm [shape: f32[2,4,256], index: 0, kind: input, shape index: {}]
  %s1 = inlined_call_operand.vmem [shape: f32[4,2], index: 1, kind: input, shape index: {}]
  %s2 = inlined_call_operand.vmem [shape: f32[1,2], index: 2, kind: input, shape index: {}]
  %s3 = inlined_call_operand.vmem [shape: f32[2,4], index: 3, kind: input, shape index: {}]
  %s4 = inlined_call_operand.vmem [shape: f32[1,4], index: 4, kind: input, shape index: {}]
  %s5 = inlined_call_operand.vmem [shape: f32[4,1], index: 5, kind: input, shape index: {}]
  %s6 = inlined_call_operand.<no memory space> [shape: f32[1,1], index: 6, kind: input, shape index: {}]
  %s7 = inlined_call_operand.hbm [shape: f32[2,4,256], index: 7, kind: output, shape index: {}]
  %s8 = sld [smem:[#allocation0]]
  $region65: #{tpu_custom_call.1} parent=0
    _
  %s10 = ssub.s32 1, %s8
  %s11 = scalar_select 0, %s10, %s8
  %v12 = vstv %s6
  %13 = vst [vmem:[#allocation2] sm:$0x1] %v12
  $region1: #{tpu_custom_call.1} parent=0
    #allocation3 [shape = 'u8[8192]{0}', space=vmem, size = 0x2000, scoped, tag = 'input window, operand 0']
    #allocation4 [shape = 's32[2]{0}', space=sflag, size = 0x8, scoped, tag = 'scoped memory for tpu_custom_call.1']
    #allocation5 [shape = 's32[2]{0}', space=sflag, size = 0x8, scoped, tag = 'scoped memory for tpu_custom_call.1']
    #allocation6 [shape = 'u8[8192]{0}', space=vmem, size = 0x2000, scoped, tag = 'output window, operand 0']
    %14 = vsyncpa [#allocation4], 0
    %s15 = scalar_lea.sflag [#allocation4], 1
    %16 = vsyncpa %s15, 0
    %17 = vsyncpa [#allocation5], 0
    %s18 = scalar_lea.sflag [#allocation5], 1
    %19 = vsyncpa %s18, 0
    loop: start=0, step=1, limit=4
    $region2: #{tpu_custom_call.1} parent=1 // loop_pre_header
      _
    $region3: #{tpu_custom_call.1} parent=1 // loop_header
      %s21 = sphi 0, %s25
      %p22 = scmp.ge.s32.totalorder %s21, 4
      %s31 = sphi 0, %s33
      %s34 = sphi 0, %s31
      %s35 = sphi 0, %s34
      %s51 = sphi 0, %s35
      %s55 = sphi 0, %s55
      %s57 = sphi 0, %s55
      %s58 = sphi 0, %s57
      %s72 = sphi 0, %s58
      %s76 = sphi 0, %s76
      %s78 = sphi 0, %s76
      %s79 = sphi 0, %s78
      %s93 = sphi 0, %s79
      %s97 = sphi 0, %s97
      %s99 = sphi 0, %s97
      %s100 = sphi 0, %s99
      %s114 = sphi 0, %s100
      %s118 = sphi 0, %s118
      %s120 = sphi 0, %s118
      %s121 = sphi 0, %s120
      %s135 = sphi 0, %s121
      %s139 = sphi 0, %s139
      %s141 = sphi 0, %s139
      %s142 = sphi 0, %s141
      %s156 = sphi 0, %s142
      %s160 = sphi 0, %s160
      %s162 = sphi 0, %s160
      %s163 = sphi 0, %s162
      %s177 = sphi 0, %s163
      %s183 = sphi 0, %s185
      %s186 = sphi 0, %s183
      %s187 = sphi 0, %s186
      %s203 = sphi 0, %s187
    $region4: #{tpu_custom_call.1} parent=1 // loop_header_branch
      %24 = sbr.rel (%p22) target = $region8
    $region5: #{tpu_custom_call.1} parent=1 // loop_body
      %s26 = ssub.s32 %s21, 1
      %s27 = ssub.s32 %s21, 2
      %s28 = sadd.s32 %s21, 1
      %s29 = ssub.s32 %s21, %s28
      %p30 = scmp.eq.s32.totalorder %s29, 0
      %s32 = sadd.s32 %s31, 1
      %s33 = scalar_select %p30, %s31, %s32
      %p36 = pneg %p30
      %p37 = scmp.eq.s32.totalorder %s21, 1
      %p38 = por %p36, %p37
      %p39 = scmp.ne.s32.totalorder %s31, %s34
      %p40 = scmp.eq.s32.totalorder %s21, 0
      %p41 = por %p39, %p40
      %p42 = scmp.ne.s32.totalorder %s31, %s34
      %p43 = scmp.eq.s32.totalorder %s26, 1
      %p44 = por %p42, %p43
      %p45 = scmp.ne.s32.totalorder %s34, %s35
      %p46 = scmp.eq.s32.totalorder %s26, 0
      %p47 = por %p45, %p46
      %p48 = scmp.ne.s32.totalorder %s34, %s35
      %p49 = scmp.eq.s32.totalorder %s27, 1
      %p50 = por %p48, %p49
      %p52 = scmp.ne.s32.totalorder %s35, %s51
      %p53 = scmp.eq.s32.totalorder %s27, 0
      %p54 = por %p52, %p53
      %s56 = sadd.s32 %s55, 1
      %p59 = scmp.eq.s32.totalorder %s21, 1
      %p60 = scmp.ne.s32.totalorder %s55, %s57
      %p61 = scmp.eq.s32.totalorder %s21, 0
      %p62 = por %p60, %p61
      %p63 = scmp.ne.s32.totalorder %s55, %s57
      %p64 = scmp.eq.s32.totalorder %s26, 1
      %p65 = por %p63, %p64
      %p66 = scmp.ne.s32.totalorder %s57, %s58
      %p67 = scmp.eq.s32.totalorder %s26, 0
      %p68 = por %p66, %p67
      %p69 = scmp.ne.s32.totalorder %s57, %s58
      %p70 = scmp.eq.s32.totalorder %s27, 1
      %p71 = por %p69, %p70
      %p73 = scmp.ne.s32.totalorder %s58, %s72
      %p74 = scmp.eq.s32.totalorder %s27, 0
      %p75 = por %p73, %p74
      %s77 = sadd.s32 %s76, 1
      %p80 = scmp.eq.s32.totalorder %s21, 1
      %p81 = scmp.ne.s32.totalorder %s76, %s78
      %p82 = scmp.eq.s32.totalorder %s21, 0
      %p83 = por %p81, %p82
      %p84 = scmp.ne.s32.totalorder %s76, %s78
      %p85 = scmp.eq.s32.totalorder %s26, 1
      %p86 = por %p84, %p85
      %p87 = scmp.ne.s32.totalorder %s78, %s79
      %p88 = scmp.eq.s32.totalorder %s26, 0
      %p89 = por %p87, %p88
      %p90 = scmp.ne.s32.totalorder %s78, %s79
      %p91 = scmp.eq.s32.totalorder %s27, 1
      %p92 = por %p90, %p91
      %p94 = scmp.ne.s32.totalorder %s79, %s93
      %p95 = scmp.eq.s32.totalorder %s27, 0
      %p96 = por %p94, %p95
      %s98 = sadd.s32 %s97, 1
      %p101 = scmp.eq.s32.totalorder %s21, 1
      %p102 = scmp.ne.s32.totalorder %s97, %s99
      %p103 = scmp.eq.s32.totalorder %s21, 0
      %p104 = por %p102, %p103
      %p105 = scmp.ne.s32.totalorder %s97, %s99
      %p106 = scmp.eq.s32.totalorder %s26, 1
      %p107 = por %p105, %p106
      %p108 = scmp.ne.s32.totalorder %s99, %s100
      %p109 = scmp.eq.s32.totalorder %s26, 0
      %p110 = por %p108, %p109
      %p111 = scmp.ne.s32.totalorder %s99, %s100
      %p112 = scmp.eq.s32.totalorder %s27, 1
      %p113 = por %p111, %p112
      %p115 = scmp.ne.s32.totalorder %s100, %s114
      %p116 = scmp.eq.s32.totalorder %s27, 0
      %p117 = por %p115, %p116
      %s119 = sadd.s32 %s118, 1
      %p122 = scmp.eq.s32.totalorder %s21, 1
      %p123 = scmp.ne.s32.totalorder %s118, %s120
      %p124 = scmp.eq.s32.totalorder %s21, 0
      %p125 = por %p123, %p124
      %p126 = scmp.ne.s32.totalorder %s118, %s120
      %p127 = scmp.eq.s32.totalorder %s26, 1
      %p128 = por %p126, %p127
      %p129 = scmp.ne.s32.totalorder %s120, %s121
      %p130 = scmp.eq.s32.totalorder %s26, 0
      %p131 = por %p129, %p130
      %p132 = scmp.ne.s32.totalorder %s120, %s121
      %p133 = scmp.eq.s32.totalorder %s27, 1
      %p134 = por %p132, %p133
      %p136 = scmp.ne.s32.totalorder %s121, %s135
      %p137 = scmp.eq.s32.totalorder %s27, 0
      %p138 = por %p136, %p137
      %s140 = sadd.s32 %s139, 1
      %p143 = scmp.eq.s32.totalorder %s21, 1
      %p144 = scmp.ne.s32.totalorder %s139, %s141
      %p145 = scmp.eq.s32.totalorder %s21, 0
      %p146 = por %p144, %p145
      %p147 = scmp.ne.s32.totalorder %s139, %s141
      %p148 = scmp.eq.s32.totalorder %s26, 1
      %p149 = por %p147, %p148
      %p150 = scmp.ne.s32.totalorder %s141, %s142
      %p151 = scmp.eq.s32.totalorder %s26, 0
      %p152 = por %p150, %p151
      %p153 = scmp.ne.s32.totalorder %s141, %s142
      %p154 = scmp.eq.s32.totalorder %s27, 1
      %p155 = por %p153, %p154
      %p157 = scmp.ne.s32.totalorder %s142, %s156
      %p158 = scmp.eq.s32.totalorder %s27, 0
      %p159 = por %p157, %p158
      %s161 = sadd.s32 %s160, 1
      %p164 = scmp.eq.s32.totalorder %s21, 1
      %p165 = scmp.ne.s32.totalorder %s160, %s162
      %p166 = scmp.eq.s32.totalorder %s21, 0
      %p167 = por %p165, %p166
      %p168 = scmp.ne.s32.totalorder %s160, %s162
      %p169 = scmp.eq.s32.totalorder %s26, 1
      %p170 = por %p168, %p169
      %p171 = scmp.ne.s32.totalorder %s162, %s163
      %p172 = scmp.eq.s32.totalorder %s26, 0
      %p173 = por %p171, %p172
      %p174 = scmp.ne.s32.totalorder %s162, %s163
      %p175 = scmp.eq.s32.totalorder %s27, 1
      %p176 = por %p174, %p175
      %p178 = scmp.ne.s32.totalorder %s163, %s177
      %p179 = scmp.eq.s32.totalorder %s27, 0
      %p180 = por %p178, %p179
      %s181 = ssub.s32 %s21, %s28
      %p182 = scmp.eq.s32.totalorder %s181, 0
      %s184 = sadd.s32 %s183, 1
      %s185 = scalar_select %p182, %s183, %s184
      %p188 = pneg %p182
      %p189 = scmp.eq.s32.totalorder %s21, 1
      %p190 = por %p188, %p189
      %p191 = scmp.ne.s32.totalorder %s183, %s186
      %p192 = scmp.eq.s32.totalorder %s21, 0
      %p193 = por %p191, %p192
      %p194 = scmp.ne.s32.totalorder %s183, %s186
      %p195 = scmp.eq.s32.totalorder %s26, 1
      %p196 = por %p194, %p195
      %p197 = scmp.ne.s32.totalorder %s186, %s187
      %p198 = scmp.eq.s32.totalorder %s26, 0
      %p199 = por %p197, %p198
      %p200 = scmp.ne.s32.totalorder %s186, %s187
      %p201 = scmp.eq.s32.totalorder %s27, 1
      %p202 = por %p200, %p201
      %p204 = scmp.ne.s32.totalorder %s187, %s203
      %p205 = scmp.eq.s32.totalorder %s27, 0
      %p206 = por %p204, %p205
      %p207 = scmp.le.s32.totalorder 1, %s21
      %p208 = scmp.lt.s32.totalorder %s21, 3
      %p209 = pnand %p207, %p208
      %p210 = pneg %p209
      // Predicated region
      $region9: #{tpu_custom_call.1} parent=5 // pred_check
        _
      $region10: #{tpu_custom_call.1} parent=5 // pred_check_branch
        %212 = sbr.rel (%p209) target = $region12
      $region11: #{tpu_custom_call.1} parent=5 // pred_region
        %s213 = ssub.s32 %s21, 1
        // Predicated region
        $region13: #{tpu_custom_call.1} parent=11 // pred_check
          %p214 = pneg %p68
        $region14: #{tpu_custom_call.1} parent=11 // pred_check_branch
          %216 = sbr.rel (%p214) target = $region16
        $region15: #{tpu_custom_call.1} parent=11 // pred_region
          _
        $region16: #{tpu_custom_call.1} parent=11 // pred_fallthru
          _
        // Predicated region
        $region17: #{tpu_custom_call.1} parent=11 // pred_check
          %p217 = pneg %p89
        $region18: #{tpu_custom_call.1} parent=11 // pred_check_branch
          %219 = sbr.rel (%p217) target = $region20
        $region19: #{tpu_custom_call.1} parent=11 // pred_region
          _
        $region20: #{tpu_custom_call.1} parent=11 // pred_fallthru
          _
        // Predicated region
        $region21: #{tpu_custom_call.1} parent=11 // pred_check
          %p220 = pneg %p110
        $region22: #{tpu_custom_call.1} parent=11 // pred_check_branch
          %222 = sbr.rel (%p220) target = $region24
        $region23: #{tpu_custom_call.1} parent=11 // pred_region
          _
        $region24: #{tpu_custom_call.1} parent=11 // pred_fallthru
          _
        // Predicated region
        $region25: #{tpu_custom_call.1} parent=11 // pred_check
          %p223 = pneg %p131
        $region26: #{tpu_custom_call.1} parent=11 // pred_check_branch
          %225 = sbr.rel (%p223) target = $region28
        $region27: #{tpu_custom_call.1} parent=11 // pred_region
          _
        $region28: #{tpu_custom_call.1} parent=11 // pred_fallthru
          _
        // Predicated region
        $region29: #{tpu_custom_call.1} parent=11 // pred_check
          %p226 = pneg %p152
        $region30: #{tpu_custom_call.1} parent=11 // pred_check_branch
          %228 = sbr.rel (%p226) target = $region32
        $region31: #{tpu_custom_call.1} parent=11 // pred_region
          _
        $region32: #{tpu_custom_call.1} parent=11 // pred_fallthru
          _
        // Predicated region
        $region33: #{tpu_custom_call.1} parent=11 // pred_check
          %p229 = pneg %p173
        $region34: #{tpu_custom_call.1} parent=11 // pred_check_branch
          %231 = sbr.rel (%p229) target = $region36
        $region35: #{tpu_custom_call.1} parent=11 // pred_region
          _
        $region36: #{tpu_custom_call.1} parent=11 // pred_fallthru
          _
      $region12: #{tpu_custom_call.1} parent=5 // pred_fallthru
        _
      %p232 = scmp.lt.s32.totalorder %s21, 2
      // Predicated region
      $region37: #{tpu_custom_call.1} parent=5 // pred_check
        %p233 = pneg %p232
      $region38: #{tpu_custom_call.1} parent=5 // pred_check_branch
        %235 = sbr.rel (%p233) target = $region40
      $region39: #{tpu_custom_call.1} parent=5 // pred_region
        // Predicated region
        $region41: #{tpu_custom_call.1} parent=39 // pred_check
          %p236 = pneg %p41
        $region42: #{tpu_custom_call.1} parent=39 // pred_check_branch
          %238 = sbr.rel (%p236) target = $region44
        $region43: #{tpu_custom_call.1} parent=39 // pred_region
          %s239 = sand.u32 %s31, 1
          %s240 = scalar_lea.sflag [#allocation4], %s239
          %s241 = sand.u32 %s31, 1
          %s242 = smul.addr %s241, 8
          %s243 = scalar_lea.vmem [#allocation3], %s242
          %s245 = ssub.s32 128, 128
          %246 = vsyncadd %s240, %s245
          %s247 = smul.addr %s21, 2
          %s248 = smul.addr %s247, 64
          %s249 = scalar_lea.hbm %s0, %s248
          %s251 = sshll.u32 %s243, 4
          %s252 = int_to_ptr.vmem [resolvable:$true] %s251
          %254 = dma.hbm_to_vmem [thread:$0]  %s249, 128, %s252, %s240
        $region44: #{tpu_custom_call.1} parent=39 // pred_fallthru
          _
      $region40: #{tpu_custom_call.1} parent=5 // pred_fallthru
        _
      %p255 = scmp.le.s32.totalorder 1, %s21
      %p256 = scmp.lt.s32.totalorder %s21, 3
      %p257 = pnand %p255, %p256
      %p258 = pneg %p257
      // Predicated region
      $region45: #{tpu_custom_call.1} parent=5 // pred_check
        _
      $region46: #{tpu_custom_call.1} parent=5 // pred_check_branch
        %260 = sbr.rel (%p257) target = $region48
      $region47: #{tpu_custom_call.1} parent=5 // pred_region
        %s261 = ssub.s32 %s21, 1
        %s262 = sand.u32 %s34, 1
        %s263 = scalar_lea.sflag [#allocation4], %s262
        %s264 = sand.u32 %s34, 1
        %s265 = smul.addr %s264, 8
        %s266 = scalar_lea.vmem [#allocation3], %s265
        // Predicated region
        $region49: #{tpu_custom_call.1} parent=47 // pred_check
          %p267 = pneg %p47
        $region50: #{tpu_custom_call.1} parent=47 // pred_check_branch
          %269 = sbr.rel (%p267) target = $region52
        $region51: #{tpu_custom_call.1} parent=47 // pred_region
          %270 = dma.done %s263, 128
        $region52: #{tpu_custom_call.1} parent=47 // pred_fallthru
          _
        %s271 = sand.u32 %s34, 1
        %s272 = scalar_lea.sflag [#allocation4], %s271
        %s273 = sand.u32 %s34, 1
        %s274 = smul.addr %s273, 8
        %s275 = scalar_lea.vmem [#allocation3], %s274
        %p276 = pneg %p47
        %p277 = pneg %p44
        %p278 = pneg %p68
        %p279 = pneg %p65
        %p280 = pneg %p89
        %p281 = pneg %p86
        %p282 = pneg %p110
        %p283 = pneg %p107
        %p284 = pneg %p131
        %p285 = pneg %p128
        %p286 = pneg %p152
        %p287 = pneg %p149
        %p288 = pneg %p173
        %p289 = pneg %p170
        %p290 = pneg %p199
        %p291 = pneg %p196
        %s292 = sand.u32 %s186, 1
        %s293 = scalar_lea.sflag [#allocation5], %s292
        %s294 = sand.u32 %s186, 1
        %s295 = smul.addr %s294, 8
        %s296 = scalar_lea.vmem [#allocation6], %s295
        %v297 = vld [vmem:[%s266] sm:$0xff]
        %v299 = vcombine.high %v297, %v297
        %vm301 = vcmask 1043456
        %v302 = vsel %vm301, %v297, 0.0
        %v303 = vsel %vm301, %v299, 0.0
        %v304 = vadd.f32 %v302, %v303
        %305 = vadd.xlane.f32.xlu0 %v304
        %v306 = vpop.xlane.xlu0 %305
        %v307 = vmul.f32 %v306, 0.00390625
        %v308 = vld [vmem:[%s1] sm:$0xf]
        %v309 = vld [vmem:[%s2] sm:$0x1]
        %v311 = vlaneseq
        %v312 = vand.u32 %v311, 127
        %v313 = vlaneseq
        %v314 = vshrl.u32 %v313, 7
        %v315 = vsub.s32 %v312, %v314
        %v316 = vrot.slane %v307, %v315
        %vm317 = vcmask 31744
        %v318 = vsel %vm317, %v316, 0
        %v321 = vsel %vm301, %v308, 0
        %323 = vmatprep.subr.mxu0 0.0
        %324 = vmatpush1.msra.mxu0 %v321
        %325 = vmatprep.subr.mxu0 0.0
        %326 = vmatpush1.msra.mxu0 0.0
        %327 = vmatprep.subr.mxu0 0.0
        %328 = vmatpush1.msra.mxu0 0.0
        %329 = vmatprep.subr.mxu0 0.0
        %330 = vmatpush1.msra.mxu0 0.0
        %331 = vmatprep.subr.mxu0 0.0
        %332 = vmatpush1.msra.mxu0 0.0
        %333 = vmatprep.subr.mxu0 0.0
        %334 = vmatpush1.msra.mxu0 0.0
        %335 = vmatprep.subr.mxu0 0.0
        %336 = vmatpush1.msra.mxu0 0.0
        %337 = vmatprep.subr.mxu0 0.0
        %338 = vmatpush1.msra.mxu0 0.0
        %339 = vmatprep.subr.mxu0 0.0
        %340 = vmatpush1.msra.mxu0 0.0
        %341 = vmatprep.subr.mxu0 0.0
        %342 = vmatpush1.msra.mxu0 0.0
        %343 = vmatprep.subr.mxu0 0.0
        %344 = vmatpush1.msra.mxu0 0.0
        %345 = vmatprep.subr.mxu0 0.0
        %346 = vmatpush1.msra.mxu0 0.0
        %347 = vmatprep.subr.mxu0 0.0
        %348 = vmatpush1.msra.mxu0 0.0
        %349 = vmatprep.subr.mxu0 0.0
        %350 = vmatpush1.msra.mxu0 0.0
        %351 = vmatprep.subr.mxu0 0.0
        %352 = vmatpush1.msra.mxu0 0.0
        %353 = vmatprep.subr.mxu0 0.0
        %354 = vmatpush1.msra.mxu0 0.0
        %355 = vmatprep.subr.mxu0 0.0
        %356 = vmatpush1.msra.mxu0 0.0
        %357 = vmatprep.subr.mxu0 0.0
        %358 = vmatpush1.msra.mxu0 0.0
        %359 = vmatprep.subr.mxu0 0.0
        %360 = vmatpush1.msra.mxu0 0.0
        %361 = vmatprep.subr.mxu0 0.0
        %362 = vmatpush1.msra.mxu0 0.0
        %363 = vmatprep.subr.mxu0 0.0
        %364 = vmatpush1.msra.mxu0 0.0
        %365 = vmatprep.subr.mxu0 0.0
        %366 = vmatpush1.msra.mxu0 0.0
        %367 = vmatprep.subr.mxu0 0.0
        %368 = vmatpush1.msra.mxu0 0.0
        %369 = vmatprep.subr.mxu0 0.0
        %370 = vmatpush1.msra.mxu0 0.0
        %371 = vmatprep.subr.mxu0 0.0
        %372 = vmatpush1.msra.mxu0 0.0
        %373 = vmatprep.subr.mxu0 0.0
        %374 = vmatpush1.msra.mxu0 0.0
        %375 = vmatprep.subr.mxu0 0.0
        %376 = vmatpush1.msra.mxu0 0.0
        %377 = vmatprep.subr.mxu0 0.0
        %378 = vmatpush1.msra.mxu0 0.0
        %379 = vmatprep.subr.mxu0 0.0
        %380 = vmatpush1.msra.mxu0 0.0
        %381 = vmatprep.subr.mxu0 0.0
        %382 = vmatpush1.msra.mxu0 0.0
        %383 = vmatprep.subr.mxu0 0.0
        %384 = vmatpush1.msra.mxu0 0.0
        %385 = vmatprep.subr.mxu0 0.0
        %386 = vmatpush1.msra.mxu0 0.0
        %387 = vmatprep.mubr.f32.mxu0 0.0
        %388 = vmatmul.mubr.f32.gmra.mrb[0].mxu0 %v318
        %v389 = vpop.f32.mrb[0].mxu0
        %v390 = vadd.f32 %v309, %v389
        %v391 = vpop.f32.mrb[0].mxu0
        %392 = vdwg.mxu0
        %v393 = vmax.f32 %v390, 0.0
        %v394 = vld [vmem:[%s3] sm:$0x3]
        %v395 = vld [vmem:[%s4] sm:$0x1]
        %vm396 = vcmask 15360
        %v398 = vsel %vm396, %v393, 0
        %vm400 = vcmask 1041408
        %v402 = vsel %vm400, %v394, 0
        %404 = vmatprep.subr.mxu0 0.0
        %405 = vmatpush1.msra.mxu0 %v402
        %406 = vmatprep.subr.mxu0 0.0
        %407 = vmatpush1.msra.mxu0 0.0
        %408 = vmatprep.subr.mxu0 0.0
        %409 = vmatpush1.msra.mxu0 0.0
        %410 = vmatprep.subr.mxu0 0.0
        %411 = vmatpush1.msra.mxu0 0.0
        %412 = vmatprep.subr.mxu0 0.0
        %413 = vmatpush1.msra.mxu0 0.0
        %414 = vmatprep.subr.mxu0 0.0
        %415 = vmatpush1.msra.mxu0 0.0
        %416 = vmatprep.subr.mxu0 0.0
        %417 = vmatpush1.msra.mxu0 0.0
        %418 = vmatprep.subr.mxu0 0.0
        %419 = vmatpush1.msra.mxu0 0.0
        %420 = vmatprep.subr.mxu0 0.0
        %421 = vmatpush1.msra.mxu0 0.0
        %422 = vmatprep.subr.mxu0 0.0
        %423 = vmatpush1.msra.mxu0 0.0
        %424 = vmatprep.subr.mxu0 0.0
        %425 = vmatpush1.msra.mxu0 0.0
        %426 = vmatprep.subr.mxu0 0.0
        %427 = vmatpush1.msra.mxu0 0.0
        %428 = vmatprep.subr.mxu0 0.0
        %429 = vmatpush1.msra.mxu0 0.0
        %430 = vmatprep.subr.mxu0 0.0
        %431 = vmatpush1.msra.mxu0 0.0
        %432 = vmatprep.subr.mxu0 0.0
        %433 = vmatpush1.msra.mxu0 0.0
        %434 = vmatprep.subr.mxu0 0.0
        %435 = vmatpush1.msra.mxu0 0.0
        %436 = vmatprep.subr.mxu0 0.0
        %437 = vmatpush1.msra.mxu0 0.0
        %438 = vmatprep.subr.mxu0 0.0
        %439 = vmatpush1.msra.mxu0 0.0
        %440 = vmatprep.subr.mxu0 0.0
        %441 = vmatpush1.msra.mxu0 0.0
        %442 = vmatprep.subr.mxu0 0.0
        %443 = vmatpush1.msra.mxu0 0.0
        %444 = vmatprep.subr.mxu0 0.0
        %445 = vmatpush1.msra.mxu0 0.0
        %446 = vmatprep.subr.mxu0 0.0
        %447 = vmatpush1.msra.mxu0 0.0
        %448 = vmatprep.subr.mxu0 0.0
        %449 = vmatpush1.msra.mxu0 0.0
        %450 = vmatprep.subr.mxu0 0.0
        %451 = vmatpush1.msra.mxu0 0.0
        %452 = vmatprep.subr.mxu0 0.0
        %453 = vmatpush1.msra.mxu0 0.0
        %454 = vmatprep.subr.mxu0 0.0
        %455 = vmatpush1.msra.mxu0 0.0
        %456 = vmatprep.subr.mxu0 0.0
        %457 = vmatpush1.msra.mxu0 0.0
        %458 = vmatprep.subr.mxu0 0.0
        %459 = vmatpush1.msra.mxu0 0.0
        %460 = vmatprep.subr.mxu0 0.0
        %461 = vmatpush1.msra.mxu0 0.0
        %462 = vmatprep.subr.mxu0 0.0
        %463 = vmatpush1.msra.mxu0 0.0
        %464 = vmatprep.subr.mxu0 0.0
        %465 = vmatpush1.msra.mxu0 0.0
        %466 = vmatprep.subr.mxu0 0.0
        %467 = vmatpush1.msra.mxu0 0.0
        %468 = vmatprep.mubr.f32.mxu0 0.0
        %469 = vmatmul.mubr.f32.gmra.mrb[0].mxu0 %v398
        %v470 = vpop.f32.mrb[0].mxu0
        %v471 = vadd.f32 %v395, %v470
        %v472 = vpop.f32.mrb[0].mxu0
        %473 = vdwg.mxu0
        %v474 = vxor.u32 %v471, 2147483648
        %v475 = vmul.f32 %v474, 1.442695
        %v476 = vpow.pop %v475
        %v477 = vadd.f32 %v476, 1.0
        %v478 = vrcp.pop %v477
        %v479 = vmul.f32 1.0, %v478
        %v480 = vld [vmem:[%s5] sm:$0xf]
        %482 = vset.pattern.permute.xlu0 0
        %483 = vperm.xlu0 %482, %v480
        %v484 = vpop.permute.xlu0 %483
        %v486 = vunpack.c.l.s4 839922192
        %v487 = vunpack.c.0.s8 %v486
        %v488 = vlaneseq
        %v489 = vshrl.u32 %v488, 7
        %v490 = vsub.s32 %v487, %v489
        %v491 = vrot.slane %v484, %v490
        %v493 = vmul.f32 %v297, %v491
        %v495 = vcombine.high %v493, %v493
        %v497 = vsel %vm301, %v493, 0.0
        %v498 = vrot.slane %v497, 4
        %v499 = vadd.f32 %v497, %v498
        %v500 = vrot.slane %v499, 2
        %v501 = vadd.f32 %v499, %v500
        %v502 = vrot.slane %v501, 1
        %v503 = vadd.f32 %v501, %v502
        %v504 = vsel %vm301, %v495, 0.0
        %v505 = vrot.slane %v504, 4
        %v506 = vadd.f32 %v504, %v505
        %v507 = vrot.slane %v506, 2
        %v508 = vadd.f32 %v506, %v507
        %v509 = vrot.slane %v508, 1
        %v510 = vadd.f32 %v508, %v509
        %v511 = vld [vmem:[#allocation2] sm:$0x1]
        %513 = vset.pattern.permute.xlu0 0
        %514 = vperm.xlu0 %513, %v511
        %v515 = vpop.permute.xlu0 %514
        %v517 = vlaneseq
        %v518 = vshrl.u32 %v517, 7
        %v519 = vsub.s32 0, %v518
        %v520 = vrot.slane %v515, %v519
        %v521 = vadd.f32 %v503, %v520
        %v522 = vadd.f32 %v510, %v520
        %v523 = vxor.u32 %v521, 2147483648
        %v524 = vxor.u32 %v522, 2147483648
        %v525 = vmul.f32 %v523, 1.442695
        %v526 = vpow.pop %v525
        %v527 = vmul.f32 %v524, 1.442695
        %v528 = vpow.pop %v527
        %v529 = vadd.f32 %v526, 1.0
        %v530 = vadd.f32 %v528, 1.0
        %v531 = vrcp.pop %v529
        %v532 = vmul.f32 1.0, %v531
        %v533 = vrcp.pop %v530
        %v534 = vmul.f32 1.0, %v533
        %v535 = vlaneseq
        %v536 = vshrl.u32 %v535, 7
        %v537 = vsub.s32 0, %v536
        %v538 = vrot.slane %v479, %v537
        %540 = vbcast.lane.b32.xlu0 %v538, 256
        %v541 = vpop.permute.xlu0 %540
        %v544 = vunpack.c.l.s4 839922192
        %v545 = vunpack.c.0.s8 %v544
        %v546 = vlaneseq
        %v547 = vshrl.u32 %v546, 7
        %v548 = vsub.s32 %v545, %v547
        %v549 = vrot.slane %v541, %v548
        %v551 = vmul.f32 %v297, %v549
        %v554 = vcombine.low %v532, %v534
        %v556 = vmul.f32 %v297, %v554
        %v557 = vmax.f32 %v551, %v556
        %558 = vst [vmem:[%s296] sm:$0xff] %v557
        %s559 = sand.u32 %s186, 1
        %s560 = scalar_lea.sflag [#allocation5], %s559
        %s561 = sand.u32 %s186, 1
        %s562 = smul.addr %s561, 8
        %s563 = scalar_lea.vmem [#allocation6], %s562
        // Predicated region
        $region53: #{tpu_custom_call.1} parent=47 // pred_check
          %p564 = pneg %p196
        $region54: #{tpu_custom_call.1} parent=47 // pred_check_branch
          %566 = sbr.rel (%p564) target = $region56
        $region55: #{tpu_custom_call.1} parent=47 // pred_region
          %s568 = ssub.s32 128, 128
          %569 = vsyncadd %s560, %s568
          %s570 = smul.addr %s26, 2
          %s571 = smul.addr %s570, 64
          %s572 = scalar_lea.hbm %s7, %s571
          %s574 = sshll.u32 %s563, 4
          %s575 = int_to_ptr.vmem [resolvable:$true] %s574
          %577 = dma.vmem_to_hbm [thread:$0]  %s575, 128, %s572, %s560
        $region56: #{tpu_custom_call.1} parent=47 // pred_fallthru
          _
      $region48: #{tpu_custom_call.1} parent=5 // pred_fallthru
        _
      %p578 = scmp.le.s32.totalorder 2, %s21
      // Predicated region
      $region57: #{tpu_custom_call.1} parent=5 // pred_check
        %p579 = pneg %p578
      $region58: #{tpu_custom_call.1} parent=5 // pred_check_branch
        %581 = sbr.rel (%p579) target = $region60
      $region59: #{tpu_custom_call.1} parent=5 // pred_region
        %s582 = ssub.s32 %s21, 2
        // Predicated region
        $region61: #{tpu_custom_call.1} parent=59 // pred_check
          %p583 = pneg %p202
        $region62: #{tpu_custom_call.1} parent=59 // pred_check_branch
          %585 = sbr.rel (%p583) target = $region64
        $region63: #{tpu_custom_call.1} parent=59 // pred_region
          %s586 = sand.u32 %s187, 1
          %s587 = scalar_lea.sflag [#allocation5], %s586
          %s588 = sand.u32 %s187, 1
          %s589 = smul.addr %s588, 8
          %s590 = scalar_lea.vmem [#allocation6], %s589
          %591 = dma.done %s587, 128
        $region64: #{tpu_custom_call.1} parent=59 // pred_fallthru
          _
      $region60: #{tpu_custom_call.1} parent=5 // pred_fallthru
        _
    $region6: #{tpu_custom_call.1} parent=1 // loop_footer
      %s25 = sadd.s32 1, %s21
    $region7: #{tpu_custom_call.1} parent=1 // loop_footer_branch
      %20 = sbr.rel target = $region3
    $region8: #{tpu_custom_call.1} parent=1 // loop_exit
      _
    %592 = vsyncpa [#allocation4], 1
    %s593 = scalar_lea.sflag [#allocation4], 1
    %594 = vsyncpa %s593, 1
    %595 = vsyncpa [#allocation5], 1
    %s596 = scalar_lea.sflag [#allocation5], 1
    %597 = vsyncpa %s596, 1

</llo_original>
